<compile_context>
chip_gen: v6e
topology: v6e:2x2x1
jax: 0.10.0
libtpu: 0.0.40
codegen_flags: <defaults>
</compile_context>

<pallas_src>
import functools

import jax
import jax.numpy as jnp
from jax.experimental import pallas as pl
from jax.experimental.pallas import tpu as pltpu


def _hetero_triadic_kernel(adj_ref, x_ref, srcm_ref, dstm_ref, w_ref, o_ref,
                           *, sid):
    """One grid step = one tile of destination rows (fully parallel).

    adj_ref  : [TM, N]       adjacency rows for this dst-row tile
    x_ref    : [N, 4F]       packed node features [ns | nv_x | nv_y | nv_z]
    srcm_ref : [N, S]        distinct 0/1 source-selection vectors (deduped)
    dstm_ref : [TM, E]       per-etype 0/1 destination-selection vectors
    w_ref    : [E, 4F, 4F]   per-etype block_diag(Ws, Wv, Wv, Wv), pre-scaled
                             by the mean-over-non-empty-etypes weight
    o_ref    : [TM, 4F]      packed output (scalar + 3 vector components)
    sid      : static tuple, sid[e] = index of etype e's src selection in srcm
    """
    adj = adj_ref[...]                                    # [TM, N]
    x = x_ref[...]                                        # [N, 4F]

    # One full-lane-width aggregation matmul per *distinct* source selection:
    #   mask_e @ X == diag(dst_e) @ adj @ diag(src_e) @ X
    n_src = srcm_ref.shape[1]
    ys = [
        jnp.dot(adj, srcm_ref[:, s:s + 1] * x,
                preferred_element_type=jnp.float32)        # [TM, 4F]
        for s in range(n_src)
    ]

    # Per-etype block-diagonal transform + dst masking. E is tiny and static,
    # so the loop is unrolled at trace time; the mean weight is already folded
    # into w_ref, so empty etypes contribute exactly zero.
    out = jnp.zeros(o_ref.shape, jnp.float32)
    for e in range(len(sid)):
        contrib = jnp.dot(ys[sid[e]], w_ref[e],
                          preferred_element_type=jnp.float32)  # [TM, 4F]
        out = out + dstm_ref[:, e:e + 1] * contrib
    o_ref[...] = out                                       # single 128-lane store


def hetero_triadic_graph_conv(adj, atomic, ns, nv, Ws, Wv, etype_ids,
                              *, row_tile=None):
    """Wrapper: glue (src/dst selections, empty-etype weights, feature packing)
    in JAX; the masked aggregation / transform hot path inside the kernel.

    adj      : [N, N]    f32, adj[i, j] = 1  <=>  edge j -> i
    atomic   : [N]       i32, atomic type id of each node
    ns       : [N, F]    f32 scalar node features
    nv       : [N, 3, F] f32 vectorial node features
    Ws, Wv   : [E, F, F] f32 per-etype linear weights
    etype_ids: list of (src1, dst, src2) integer type triplets
    """
    N, F = ns.shape
    E = len(etype_ids)
    DF = 4 * F

    # --- dedupe source selections (static, on the Python-level etype list) --
    src_keys, sid = [], []
    for (s1, _, s2) in etype_ids:
        key = tuple(sorted((s1, s2)))
        if key not in src_keys:
            src_keys.append(key)
        sid.append(src_keys.index(key))
    S = len(src_keys)

    # --- tiny selection matrices instead of a dense [E, N, N] mask tensor ---
    src_mat = jnp.stack(
        [((atomic == a) | (atomic == b)).astype(jnp.float32) for (a, b) in src_keys],
        axis=1)                                                      # [N, S]
    dst_mat = jnp.stack(
        [(atomic == d).astype(jnp.float32) for (_, d, _) in etype_ids],
        axis=1)                                                      # [N, E]

    # "if sub_g.number_of_edges() == 0: continue" + mean over the rest:
    # edge count per etype = dst_e . (adj @ src_{sid(e)})   (no dense masks)
    deg = adj @ src_mat                                              # [N, S]
    counts = jnp.stack(
        [jnp.sum(dst_mat[:, e] * deg[:, sid[e]]) for e in range(E)])  # [E]
    has_edges = (counts > 0).astype(jnp.float32)
    denom = jnp.maximum(has_edges.sum(), 1.0)
    weights = has_edges / denom                                      # [E]

    # --- lane-dense feature packing: [ns | nv_x | nv_y | nv_z] -> [N, 4F] ---
    x = jnp.concatenate([ns, nv[:, 0, :], nv[:, 1, :], nv[:, 2, :]], axis=1)

    # --- packed block-diagonal transforms, mean weight folded in ------------
    Z = jnp.zeros((E, F, F), Ws.dtype)
    w_packed = jnp.concatenate([
        jnp.concatenate([Ws, Z, Z, Z], axis=2),
        jnp.concatenate([Z, Wv, Z, Z], axis=2),
        jnp.concatenate([Z, Z, Wv, Z], axis=2),
        jnp.concatenate([Z, Z, Z, Wv], axis=2),
    ], axis=1)                                                       # [E, 4F, 4F]
    w_packed = weights[:, None, None] * w_packed

    # --- dst-row tiling (independent rows -> "parallel" / megacore) ---------
    TM = N if row_tile is None else row_tile
    assert N % TM == 0 and (TM == N or TM % 8 == 0)
    grid = (N // TM,)

    kernel = functools.partial(_hetero_triadic_kernel, sid=tuple(sid))

    out = pl.pallas_call(
        kernel,
        out_shape=jax.ShapeDtypeStruct((N, DF), jnp.float32),
        grid_spec=pltpu.PrefetchScalarGridSpec(
            num_scalar_prefetch=0,
            grid=grid,
            in_specs=[
                pl.BlockSpec((TM, N), lambda i: (i, 0)),         # adj row tile
                pl.BlockSpec((N, DF), lambda i: (0, 0)),         # packed features
                pl.BlockSpec((N, S), lambda i: (0, 0)),          # src selections
                pl.BlockSpec((TM, E), lambda i: (i, 0)),         # dst selections
                pl.BlockSpec((E, DF, DF), lambda i: (0, 0, 0)),  # packed weights
            ],
            out_specs=pl.BlockSpec((TM, DF), lambda i: (i, 0)),  # packed output
        ),
        compiler_params=pltpu.CompilerParams(
            dimension_semantics=("parallel",)),
    )(adj, x, src_mat, dst_mat, w_packed)

    out_s = out[:, :F]                                               # [N, F]
    out_v = jnp.stack([out[:, F:2 * F], out[:, 2 * F:3 * F], out[:, 3 * F:]],
                      axis=1)                                        # [N, 3, F]
    return out_s, out_v


def _reference(adj, atomic, ns, nv, Ws, Wv, etype_ids):
    """Pure-JAX reference mirroring the PyTorch loop (stack + mean)."""
    srsts, vrsts = [], []
    for e, (s1, d, s2) in enumerate(etype_ids):
        dst_mask = (atomic == d).astype(jnp.float32)
        src_mask = ((atomic == s1) | (atomic == s2)).astype(jnp.float32)
        M = adj * dst_mask[:, None] * src_mask[None, :]
        if float(M.sum()) == 0.0:
            continue
        agg_s = M @ ns                                        # [N, F]
        agg_v = jnp.einsum('ij,jcf->icf', M, nv)              # [N, 3, F]
        srsts.append(agg_s @ Ws[e])
        vrsts.append(jnp.einsum('icf,fg->icg', agg_v, Wv[e]))
    return (jnp.stack(srsts).mean(axis=0), jnp.stack(vrsts).mean(axis=0))


if __name__ == "__main__":
    key = jax.random.PRNGKey(0)
    k_adj, k_at, k_ns, k_nv, k_ws, k_wv = jax.random.split(key, 6)

    N, F = 32, 32          # nodes, feature width (4F = 128 lanes when packed)
    # Two atomic species (0, 1) -> the 6 distinct triadic edge types s1-d-s2
    etype_ids = [(0, 0, 0), (0, 0, 1), (1, 0, 1),
                 (0, 1, 0), (0, 1, 1), (1, 1, 1)]
    E = len(etype_ids)

    adj = jax.random.bernoulli(k_adj, p=0.3, shape=(N, N)).astype(jnp.float32)
    atomic = jax.random.bernoulli(k_at, p=0.5, shape=(N,)).astype(jnp.int32)
    ns = jax.random.normal(k_ns, (N, F), dtype=jnp.float32)
    nv = jax.random.normal(k_nv, (N, 3, F), dtype=jnp.float32)

    # Deterministic synthetic per-etype module parameters (one linear per etype
    # for the scalar branch, one for the vectorial branch).
    Ws = jax.random.normal(k_ws, (E, F, F), dtype=jnp.float32) / jnp.sqrt(F)
    Wv = jax.random.normal(k_wv, (E, F, F), dtype=jnp.float32) / jnp.sqrt(F)

    out_s, out_v = hetero_triadic_graph_conv(adj, atomic, ns, nv, Ws, Wv,
                                             etype_ids, row_tile=16)
    jax.block_until_ready((out_s, out_v))

    ref_s, ref_v = _reference(adj, atomic, ns, nv, Ws, Wv, etype_ids)
    assert jnp.allclose(out_s, ref_s, rtol=1e-4, atol=1e-4), "scalar branch mismatch"
    assert jnp.allclose(out_v, ref_v, rtol=1e-4, atol=1e-4), "vector branch mismatch"

    # TODO(synk): dynamic DGL subgraph extraction (data-dependent edge lists) is
    # realised as the diag(dst) . adj . diag(src) factorization; the empty-etype
    # skip becomes a zero weight folded into the packed transforms (if every
    # etype were empty the kernel returns zeros, whereas DGL would error).
    print("KERNEL_OK")
</pallas_src>

<mosaic_0001>
module attributes {stable_mosaic.version = 11 : i64} {
  func.func @_hetero_triadic_kernel(%arg0: i32, %arg1: memref<16x32xf32, #tpu.memory_space<vmem>>, %arg2: memref<32x128xf32, #tpu.memory_space<vmem>>, %arg3: memref<32x3xf32, #tpu.memory_space<vmem>>, %arg4: memref<16x6xf32, #tpu.memory_space<vmem>>, %arg5: memref<6x128x128xf32, #tpu.memory_space<vmem>>, %arg6: memref<16x128xf32, #tpu.memory_space<vmem>>) attributes {dimension_semantics = [#tpu.dimension_semantics<parallel>], iteration_bounds = array<i64: 2>, scalar_prefetch = 0 : i64, scratch_operands = 0 : i64, tpu.core_type = #tpu.core_type<tc>, window_params = [{transform_indices = @transform_0, window_bounds = array<i64: 16, 32>}, {pipeline_mode = #tpu.pipeline_mode<synchronous>, transform_indices = @transform_1, window_bounds = array<i64: 32, 128>}, {pipeline_mode = #tpu.pipeline_mode<synchronous>, transform_indices = @transform_2, window_bounds = array<i64: 32, 3>}, {transform_indices = @transform_3, window_bounds = array<i64: 16, 6>}, {pipeline_mode = #tpu.pipeline_mode<synchronous>, transform_indices = @transform_4, window_bounds = array<i64: 6, 128, 128>}, {transform_indices = @transform_5, window_bounds = array<i64: 16, 128>}]} {
    %c0 = arith.constant 0 : index
    %c0_0 = arith.constant 0 : index
    %0 = vector.load %arg1[%c0, %c0_0] : memref<16x32xf32, #tpu.memory_space<vmem>>, vector<16x32xf32>
    %c0_1 = arith.constant 0 : index
    %c0_2 = arith.constant 0 : index
    %1 = vector.load %arg2[%c0_1, %c0_2] : memref<32x128xf32, #tpu.memory_space<vmem>>, vector<32x128xf32>
    %c0_3 = arith.constant 0 : index
    %c0_4 = arith.constant 0 : index
    %2 = vector.load %arg3[%c0_3, %c0_4] : memref<32x3xf32, #tpu.memory_space<vmem>>, vector<32x1xf32>
    %3 = vector.broadcast %2 : vector<32x1xf32> to vector<32x128xf32>
    %4 = arith.mulf %3, %1 : vector<32x128xf32>
    %cst = arith.constant dense<0.000000e+00> : vector<16x128xf32>
    %5 = tpu.matmul %0, %4, %cst {dimension_numbers = #tpu.dot_dimension_numbers<[1], [0], [0], [1], [0, 0, 1, 1], [], []>} : vector<16x32xf32>, vector<32x128xf32>, vector<16x128xf32> -> vector<16x128xf32>
    %c0_5 = arith.constant 0 : index
    %c1 = arith.constant 1 : index
    %6 = vector.load %arg3[%c0_5, %c1] : memref<32x3xf32, #tpu.memory_space<vmem>>, vector<32x1xf32>
    %7 = vector.broadcast %6 : vector<32x1xf32> to vector<32x128xf32>
    %8 = arith.mulf %7, %1 : vector<32x128xf32>
    %cst_6 = arith.constant dense<0.000000e+00> : vector<16x128xf32>
    %9 = tpu.matmul %0, %8, %cst_6 {dimension_numbers = #tpu.dot_dimension_numbers<[1], [0], [0], [1], [0, 0, 1, 1], [], []>} : vector<16x32xf32>, vector<32x128xf32>, vector<16x128xf32> -> vector<16x128xf32>
    %c0_7 = arith.constant 0 : index
    %c2 = arith.constant 2 : index
    %10 = vector.load %arg3[%c0_7, %c2] : memref<32x3xf32, #tpu.memory_space<vmem>>, vector<32x1xf32>
    %11 = vector.broadcast %10 : vector<32x1xf32> to vector<32x128xf32>
    %12 = arith.mulf %11, %1 : vector<32x128xf32>
    %cst_8 = arith.constant dense<0.000000e+00> : vector<16x128xf32>
    %13 = tpu.matmul %0, %12, %cst_8 {dimension_numbers = #tpu.dot_dimension_numbers<[1], [0], [0], [1], [0, 0, 1, 1], [], []>} : vector<16x32xf32>, vector<32x128xf32>, vector<16x128xf32> -> vector<16x128xf32>
    %cst_9 = arith.constant 0.000000e+00 : f32
    %14 = vector.broadcast %cst_9 : f32 to vector<16x128xf32>
    %c0_10 = arith.constant 0 : index
    %c0_11 = arith.constant 0 : index
    %c0_12 = arith.constant 0 : index
    %15 = vector.load %arg5[%c0_10, %c0_11, %c0_12] : memref<6x128x128xf32, #tpu.memory_space<vmem>>, vector<1x128x128xf32>
    %16 = vector.shape_cast %15 : vector<1x128x128xf32> to vector<128x128xf32>
    %cst_13 = arith.constant dense<0.000000e+00> : vector<16x128xf32>
    %17 = tpu.matmul %5, %16, %cst_13 {dimension_numbers = #tpu.dot_dimension_numbers<[1], [0], [0], [1], [0, 0, 1, 1], [], []>} : vector<16x128xf32>, vector<128x128xf32>, vector<16x128xf32> -> vector<16x128xf32>
    %c0_14 = arith.constant 0 : index
    %c0_15 = arith.constant 0 : index
    %18 = vector.load %arg4[%c0_14, %c0_15] : memref<16x6xf32, #tpu.memory_space<vmem>>, vector<16x1xf32>
    %19 = vector.broadcast %18 : vector<16x1xf32> to vector<16x128xf32>
    %20 = arith.mulf %19, %17 : vector<16x128xf32>
    %21 = arith.addf %14, %20 : vector<16x128xf32>
    %c1_16 = arith.constant 1 : index
    %c0_17 = arith.constant 0 : index
    %c0_18 = arith.constant 0 : index
    %22 = vector.load %arg5[%c1_16, %c0_17, %c0_18] : memref<6x128x128xf32, #tpu.memory_space<vmem>>, vector<1x128x128xf32>
    %23 = vector.shape_cast %22 : vector<1x128x128xf32> to vector<128x128xf32>
    %cst_19 = arith.constant dense<0.000000e+00> : vector<16x128xf32>
    %24 = tpu.matmul %9, %23, %cst_19 {dimension_numbers = #tpu.dot_dimension_numbers<[1], [0], [0], [1], [0, 0, 1, 1], [], []>} : vector<16x128xf32>, vector<128x128xf32>, vector<16x128xf32> -> vector<16x128xf32>
    %c0_20 = arith.constant 0 : index
    %c1_21 = arith.constant 1 : index
    %25 = vector.load %arg4[%c0_20, %c1_21] : memref<16x6xf32, #tpu.memory_space<vmem>>, vector<16x1xf32>
    %26 = vector.broadcast %25 : vector<16x1xf32> to vector<16x128xf32>
    %27 = arith.mulf %26, %24 : vector<16x128xf32>
    %28 = arith.addf %21, %27 : vector<16x128xf32>
    %c2_22 = arith.constant 2 : index
    %c0_23 = arith.constant 0 : index
    %c0_24 = arith.constant 0 : index
    %29 = vector.load %arg5[%c2_22, %c0_23, %c0_24] : memref<6x128x128xf32, #tpu.memory_space<vmem>>, vector<1x128x128xf32>
    %30 = vector.shape_cast %29 : vector<1x128x128xf32> to vector<128x128xf32>
    %cst_25 = arith.constant dense<0.000000e+00> : vector<16x128xf32>
    %31 = tpu.matmul %13, %30, %cst_25 {dimension_numbers = #tpu.dot_dimension_numbers<[1], [0], [0], [1], [0, 0, 1, 1], [], []>} : vector<16x128xf32>, vector<128x128xf32>, vector<16x128xf32> -> vector<16x128xf32>
    %c0_26 = arith.constant 0 : index
    %c2_27 = arith.constant 2 : index
    %32 = vector.load %arg4[%c0_26, %c2_27] : memref<16x6xf32, #tpu.memory_space<vmem>>, vector<16x1xf32>
    %33 = vector.broadcast %32 : vector<16x1xf32> to vector<16x128xf32>
    %34 = arith.mulf %33, %31 : vector<16x128xf32>
    %35 = arith.addf %28, %34 : vector<16x128xf32>
    %c3 = arith.constant 3 : index
    %c0_28 = arith.constant 0 : index
    %c0_29 = arith.constant 0 : index
    %36 = vector.load %arg5[%c3, %c0_28, %c0_29] : memref<6x128x128xf32, #tpu.memory_space<vmem>>, vector<1x128x128xf32>
    %37 = vector.shape_cast %36 : vector<1x128x128xf32> to vector<128x128xf32>
    %cst_30 = arith.constant dense<0.000000e+00> : vector<16x128xf32>
    %38 = tpu.matmul %5, %37, %cst_30 {dimension_numbers = #tpu.dot_dimension_numbers<[1], [0], [0], [1], [0, 0, 1, 1], [], []>} : vector<16x128xf32>, vector<128x128xf32>, vector<16x128xf32> -> vector<16x128xf32>
    %c0_31 = arith.constant 0 : index
    %c3_32 = arith.constant 3 : index
    %39 = vector.load %arg4[%c0_31, %c3_32] : memref<16x6xf32, #tpu.memory_space<vmem>>, vector<16x1xf32>
    %40 = vector.broadcast %39 : vector<16x1xf32> to vector<16x128xf32>
    %41 = arith.mulf %40, %38 : vector<16x128xf32>
    %42 = arith.addf %35, %41 : vector<16x128xf32>
    %c4 = arith.constant 4 : index
    %c0_33 = arith.constant 0 : index
    %c0_34 = arith.constant 0 : index
    %43 = vector.load %arg5[%c4, %c0_33, %c0_34] : memref<6x128x128xf32, #tpu.memory_space<vmem>>, vector<1x128x128xf32>
    %44 = vector.shape_cast %43 : vector<1x128x128xf32> to vector<128x128xf32>
    %cst_35 = arith.constant dense<0.000000e+00> : vector<16x128xf32>
    %45 = tpu.matmul %9, %44, %cst_35 {dimension_numbers = #tpu.dot_dimension_numbers<[1], [0], [0], [1], [0, 0, 1, 1], [], []>} : vector<16x128xf32>, vector<128x128xf32>, vector<16x128xf32> -> vector<16x128xf32>
    %c0_36 = arith.constant 0 : index
    %c4_37 = arith.constant 4 : index
    %46 = vector.load %arg4[%c0_36, %c4_37] : memref<16x6xf32, #tpu.memory_space<vmem>>, vector<16x1xf32>
    %47 = vector.broadcast %46 : vector<16x1xf32> to vector<16x128xf32>
    %48 = arith.mulf %47, %45 : vector<16x128xf32>
    %49 = arith.addf %42, %48 : vector<16x128xf32>
    %c5 = arith.constant 5 : index
    %c0_38 = arith.constant 0 : index
    %c0_39 = arith.constant 0 : index
    %50 = vector.load %arg5[%c5, %c0_38, %c0_39] : memref<6x128x128xf32, #tpu.memory_space<vmem>>, vector<1x128x128xf32>
    %51 = vector.shape_cast %50 : vector<1x128x128xf32> to vector<128x128xf32>
    %cst_40 = arith.constant dense<0.000000e+00> : vector<16x128xf32>
    %52 = tpu.matmul %13, %51, %cst_40 {dimension_numbers = #tpu.dot_dimension_numbers<[1], [0], [0], [1], [0, 0, 1, 1], [], []>} : vector<16x128xf32>, vector<128x128xf32>, vector<16x128xf32> -> vector<16x128xf32>
    %c0_41 = arith.constant 0 : index
    %c5_42 = arith.constant 5 : index
    %53 = vector.load %arg4[%c0_41, %c5_42] : memref<16x6xf32, #tpu.memory_space<vmem>>, vector<16x1xf32>
    %54 = vector.broadcast %53 : vector<16x1xf32> to vector<16x128xf32>
    %55 = arith.mulf %54, %52 : vector<16x128xf32>
    %56 = arith.addf %49, %55 : vector<16x128xf32>
    %c0_43 = arith.constant 0 : index
    %c0_44 = arith.constant 0 : index
    %57 = vector.load %arg6[%c0_43, %c0_44] : memref<16x128xf32, #tpu.memory_space<vmem>>, vector<16x128xf32>
    tpu.vector_store %arg6[%c0_43, %c0_44], %56 {strides = array<i32>} : memref<16x128xf32, #tpu.memory_space<vmem>>, vector<16x128xf32>,
    return
  }
  func.func @transform_0(%arg0: i32) -> (i32, i32) {
    %c0_i32 = arith.constant 0 : i32
    %c0_i32_0 = arith.constant 0 : i32
    return %arg0, %c0_i32 : i32, i32
  }
  func.func @transform_1(%arg0: i32) -> (i32, i32) {
    %c0_i32 = arith.constant 0 : i32
    %c0_i32_0 = arith.constant 0 : i32
    %c0_i32_1 = arith.constant 0 : i32
    return %c0_i32, %c0_i32_0 : i32, i32
  }
  func.func @transform_2(%arg0: i32) -> (i32, i32) {
    %c0_i32 = arith.constant 0 : i32
    %c0_i32_0 = arith.constant 0 : i32
    %c0_i32_1 = arith.constant 0 : i32
    return %c0_i32, %c0_i32_0 : i32, i32
  }
  func.func @transform_3(%arg0: i32) -> (i32, i32) {
    %c0_i32 = arith.constant 0 : i32
    %c0_i32_0 = arith.constant 0 : i32
    return %arg0, %c0_i32 : i32, i32
  }
  func.func @transform_4(%arg0: i32) -> (i32, i32, i32) {
    %c0_i32 = arith.constant 0 : i32
    %c0_i32_0 = arith.constant 0 : i32
    %c0_i32_1 = arith.constant 0 : i32
    %c0_i32_2 = arith.constant 0 : i32
    return %c0_i32, %c0_i32_0, %c0_i32_1 : i32, i32, i32
  }
  func.func @transform_5(%arg0: i32) -> (i32, i32) {
    %c0_i32 = arith.constant 0 : i32
    %c0_i32_0 = arith.constant 0 : i32
    return %arg0, %c0_i32 : i32, i32
  }
}

</mosaic_0001>

<llo_original>
// kernel: tpu_custom_call.1
$region0: #{tpu_custom_call.1}
  #allocation0 [shape = 'u32[]', space=smem, size = 0x4, offset = 0x4, fixed_abs, tag = 'smem constant byte address 0x4 - core index']
  #allocation1 [shape = 'u32[144,128]{1,0:T(1,128)}', space=vmem, size = 0x12000, scoped, tag = 'internal scratch']
  %s0 = inlined_call_operand.vmem [shape: f32[32,32], index: 0, kind: input, shape index: {}]
  %s1 = inlined_call_operand.vmem [shape: f32[32,128], index: 1, kind: input, shape index: {}]
  %s2 = inlined_call_operand.vmem [shape: f32[32,3], index: 2, kind: input, shape index: {}]
  %s3 = inlined_call_operand.vmem [shape: f32[32,6], index: 3, kind: input, shape index: {}]
  %s4 = inlined_call_operand.hbm [shape: f32[6,128,128], index: 4, kind: input, shape index: {}]
  %s5 = inlined_call_operand.hbm [shape: f32[32,128], index: 5, kind: output, shape index: {}]
  %s6 = sld [smem:[#allocation0]]
  $region57: #{tpu_custom_call.1} parent=0
    _
  %s8 = ssub.s32 1, %s6
  %s9 = scalar_select 0, %s8, %s6
  $region1: #{tpu_custom_call.1} parent=0
    #allocation2 [shape = 'u8[393216]{0}', space=vmem, size = 0x60000, scoped, tag = 'input window, operand 4, single buffered']
    #allocation3 [shape = 's32[2]{0}', space=sflag, size = 0x8, scoped, tag = 'scoped memory for tpu_custom_call.1']
    #allocation4 [shape = 's32[2]{0}', space=sflag, size = 0x8, scoped, tag = 'scoped memory for tpu_custom_call.1']
    #allocation5 [shape = 'u8[16384]{0}', space=vmem, size = 0x4000, scoped, tag = 'output window, operand 0']
    %10 = vsyncpa [#allocation3], 0
    %11 = vsyncpa [#allocation4], 0
    %s12 = scalar_lea.sflag [#allocation4], 1
    %13 = vsyncpa %s12, 0
    loop: start=0, step=1, limit=4
    $region2: #{tpu_custom_call.1} parent=1 // loop_pre_header
      _
    $region3: #{tpu_custom_call.1} parent=1 // loop_header
      %s15 = sphi 0, %s19
      %p16 = scmp.ge.s32.totalorder %s15, 4
      %s25 = sphi 0, %s27
      %s28 = sphi 0, %s25
      %s29 = sphi 0, %s28
      %s45 = sphi 0, %s29
      %s49 = sphi 0, %s49
      %s51 = sphi 0, %s49
      %s52 = sphi 0, %s51
      %s66 = sphi 0, %s52
      %s70 = sphi 0, %s70
      %s72 = sphi 0, %s70
      %s73 = sphi 0, %s72
      %s87 = sphi 0, %s73
      %s93 = sphi 0, %s95
      %s96 = sphi 0, %s93
      %s97 = sphi 0, %s96
      %s113 = sphi 0, %s97
      %s117 = sphi 0, %s117
      %s119 = sphi 0, %s117
      %s120 = sphi 0, %s119
      %s134 = sphi 0, %s120
      %s140 = sphi 0, %s142
      %s143 = sphi 0, %s140
      %s144 = sphi 0, %s143
      %s160 = sphi 0, %s144
    $region4: #{tpu_custom_call.1} parent=1 // loop_header_branch
      %18 = sbr.rel (%p16) target = $region8
    $region5: #{tpu_custom_call.1} parent=1 // loop_body
      %s20 = ssub.s32 %s15, 1
      %s21 = ssub.s32 %s15, 2
      %s22 = sadd.s32 %s15, 1
      %s23 = ssub.s32 %s15, %s22
      %p24 = scmp.eq.s32.totalorder %s23, 0
      %s26 = sadd.s32 %s25, 1
      %s27 = scalar_select %p24, %s25, %s26
      %p30 = pneg %p24
      %p31 = scmp.eq.s32.totalorder %s15, 1
      %p32 = por %p30, %p31
      %p33 = scmp.ne.s32.totalorder %s25, %s28
      %p34 = scmp.eq.s32.totalorder %s15, 0
      %p35 = por %p33, %p34
      %p36 = scmp.ne.s32.totalorder %s25, %s28
      %p37 = scmp.eq.s32.totalorder %s20, 1
      %p38 = por %p36, %p37
      %p39 = scmp.ne.s32.totalorder %s28, %s29
      %p40 = scmp.eq.s32.totalorder %s20, 0
      %p41 = por %p39, %p40
      %p42 = scmp.ne.s32.totalorder %s28, %s29
      %p43 = scmp.eq.s32.totalorder %s21, 1
      %p44 = por %p42, %p43
      %p46 = scmp.ne.s32.totalorder %s29, %s45
      %p47 = scmp.eq.s32.totalorder %s21, 0
      %p48 = por %p46, %p47
      %s50 = sadd.s32 %s49, 1
      %p53 = scmp.eq.s32.totalorder %s15, 1
      %p54 = scmp.ne.s32.totalorder %s49, %s51
      %p55 = scmp.eq.s32.totalorder %s15, 0
      %p56 = por %p54, %p55
      %p57 = scmp.ne.s32.totalorder %s49, %s51
      %p58 = scmp.eq.s32.totalorder %s20, 1
      %p59 = por %p57, %p58
      %p60 = scmp.ne.s32.totalorder %s51, %s52
      %p61 = scmp.eq.s32.totalorder %s20, 0
      %p62 = por %p60, %p61
      %p63 = scmp.ne.s32.totalorder %s51, %s52
      %p64 = scmp.eq.s32.totalorder %s21, 1
      %p65 = por %p63, %p64
      %p67 = scmp.ne.s32.totalorder %s52, %s66
      %p68 = scmp.eq.s32.totalorder %s21, 0
      %p69 = por %p67, %p68
      %s71 = sadd.s32 %s70, 1
      %p74 = scmp.eq.s32.totalorder %s15, 1
      %p75 = scmp.ne.s32.totalorder %s70, %s72
      %p76 = scmp.eq.s32.totalorder %s15, 0
      %p77 = por %p75, %p76
      %p78 = scmp.ne.s32.totalorder %s70, %s72
      %p79 = scmp.eq.s32.totalorder %s20, 1
      %p80 = por %p78, %p79
      %p81 = scmp.ne.s32.totalorder %s72, %s73
      %p82 = scmp.eq.s32.totalorder %s20, 0
      %p83 = por %p81, %p82
      %p84 = scmp.ne.s32.totalorder %s72, %s73
      %p85 = scmp.eq.s32.totalorder %s21, 1
      %p86 = por %p84, %p85
      %p88 = scmp.ne.s32.totalorder %s73, %s87
      %p89 = scmp.eq.s32.totalorder %s21, 0
      %p90 = por %p88, %p89
      %s91 = ssub.s32 %s15, %s22
      %p92 = scmp.eq.s32.totalorder %s91, 0
      %s94 = sadd.s32 %s93, 1
      %s95 = scalar_select %p92, %s93, %s94
      %p98 = pneg %p92
      %p99 = scmp.eq.s32.totalorder %s15, 1
      %p100 = por %p98, %p99
      %p101 = scmp.ne.s32.totalorder %s93, %s96
      %p102 = scmp.eq.s32.totalorder %s15, 0
      %p103 = por %p101, %p102
      %p104 = scmp.ne.s32.totalorder %s93, %s96
      %p105 = scmp.eq.s32.totalorder %s20, 1
      %p106 = por %p104, %p105
      %p107 = scmp.ne.s32.totalorder %s96, %s97
      %p108 = scmp.eq.s32.totalorder %s20, 0
      %p109 = por %p107, %p108
      %p110 = scmp.ne.s32.totalorder %s96, %s97
      %p111 = scmp.eq.s32.totalorder %s21, 1
      %p112 = por %p110, %p111
      %p114 = scmp.ne.s32.totalorder %s97, %s113
      %p115 = scmp.eq.s32.totalorder %s21, 0
      %p116 = por %p114, %p115
      %s118 = sadd.s32 %s117, 1
      %p121 = scmp.eq.s32.totalorder %s15, 1
      %p122 = scmp.ne.s32.totalorder %s117, %s119
      %p123 = scmp.eq.s32.totalorder %s15, 0
      %p124 = por %p122, %p123
      %p125 = scmp.ne.s32.totalorder %s117, %s119
      %p126 = scmp.eq.s32.totalorder %s20, 1
      %p127 = por %p125, %p126
      %p128 = scmp.ne.s32.totalorder %s119, %s120
      %p129 = scmp.eq.s32.totalorder %s20, 0
      %p130 = por %p128, %p129
      %p131 = scmp.ne.s32.totalorder %s119, %s120
      %p132 = scmp.eq.s32.totalorder %s21, 1
      %p133 = por %p131, %p132
      %p135 = scmp.ne.s32.totalorder %s120, %s134
      %p136 = scmp.eq.s32.totalorder %s21, 0
      %p137 = por %p135, %p136
      %s138 = ssub.s32 %s15, %s22
      %p139 = scmp.eq.s32.totalorder %s138, 0
      %s141 = sadd.s32 %s140, 1
      %s142 = scalar_select %p139, %s140, %s141
      %p145 = pneg %p139
      %p146 = scmp.eq.s32.totalorder %s15, 1
      %p147 = por %p145, %p146
      %p148 = scmp.ne.s32.totalorder %s140, %s143
      %p149 = scmp.eq.s32.totalorder %s15, 0
      %p150 = por %p148, %p149
      %p151 = scmp.ne.s32.totalorder %s140, %s143
      %p152 = scmp.eq.s32.totalorder %s20, 1
      %p153 = por %p151, %p152
      %p154 = scmp.ne.s32.totalorder %s143, %s144
      %p155 = scmp.eq.s32.totalorder %s20, 0
      %p156 = por %p154, %p155
      %p157 = scmp.ne.s32.totalorder %s143, %s144
      %p158 = scmp.eq.s32.totalorder %s21, 1
      %p159 = por %p157, %p158
      %p161 = scmp.ne.s32.totalorder %s144, %s160
      %p162 = scmp.eq.s32.totalorder %s21, 0
      %p163 = por %p161, %p162
      %p164 = scmp.le.s32.totalorder 1, %s15
      %p165 = scmp.lt.s32.totalorder %s15, 3
      %p166 = pnand %p164, %p165
      %p167 = pneg %p166
      // Predicated region
      $region9: #{tpu_custom_call.1} parent=5 // pred_check
        _
      $region10: #{tpu_custom_call.1} parent=5 // pred_check_branch
        %169 = sbr.rel (%p166) target = $region12
      $region11: #{tpu_custom_call.1} parent=5 // pred_region
        %s170 = ssub.s32 %s15, 1
        // Predicated region
        $region13: #{tpu_custom_call.1} parent=11 // pred_check
          %p171 = pneg %p62
        $region14: #{tpu_custom_call.1} parent=11 // pred_check_branch
          %173 = sbr.rel (%p171) target = $region16
        $region15: #{tpu_custom_call.1} parent=11 // pred_region
          _
        $region16: #{tpu_custom_call.1} parent=11 // pred_fallthru
          _
        // Predicated region
        $region17: #{tpu_custom_call.1} parent=11 // pred_check
          %p174 = pneg %p83
        $region18: #{tpu_custom_call.1} parent=11 // pred_check_branch
          %176 = sbr.rel (%p174) target = $region20
        $region19: #{tpu_custom_call.1} parent=11 // pred_region
          _
        $region20: #{tpu_custom_call.1} parent=11 // pred_fallthru
          _
        // Predicated region
        $region21: #{tpu_custom_call.1} parent=11 // pred_check
          %p177 = pneg %p130
        $region22: #{tpu_custom_call.1} parent=11 // pred_check_branch
          %179 = sbr.rel (%p177) target = $region24
        $region23: #{tpu_custom_call.1} parent=11 // pred_region
          %s181 = ssub.s32 12288, 12288
          %182 = vsyncadd [#allocation3], %s181
          %s183 = sshll.u32 [#allocation2], 4
          %s184 = int_to_ptr.vmem [resolvable:$true] %s183
          %189 = dma.hbm_to_vmem [thread:$0]  %s4, 12288, %s184, [#allocation3], 128, 128, 8
        $region24: #{tpu_custom_call.1} parent=11 // pred_fallthru
          _
      $region12: #{tpu_custom_call.1} parent=5 // pred_fallthru
        _
      %p190 = scmp.lt.s32.totalorder %s15, 2
      // Predicated region
      $region25: #{tpu_custom_call.1} parent=5 // pred_check
        %p191 = pneg %p190
      $region26: #{tpu_custom_call.1} parent=5 // pred_check_branch
        %193 = sbr.rel (%p191) target = $region28
      $region27: #{tpu_custom_call.1} parent=5 // pred_region
        // Predicated region
        $region29: #{tpu_custom_call.1} parent=27 // pred_check
          %p194 = pneg %p35
        $region30: #{tpu_custom_call.1} parent=27 // pred_check_branch
          %196 = sbr.rel (%p194) target = $region32
        $region31: #{tpu_custom_call.1} parent=27 // pred_region
          %s197 = smul.u32 2, %s15
          %p198 = scmp.lt.s32.totalorder %s197, 3
          %s199 = scalar_select %p198, %s197, 3
          %s200 = smul.addr %s199, 8
          %s201 = scalar_lea.vmem %s0, %s200
          %s202 = smul.u32 2, %s15
        $region32: #{tpu_custom_call.1} parent=27 // pred_fallthru
          _
        // Predicated region
        $region33: #{tpu_custom_call.1} parent=27 // pred_check
          %p203 = pneg %p103
        $region34: #{tpu_custom_call.1} parent=27 // pred_check_branch
          %205 = sbr.rel (%p203) target = $region36
        $region35: #{tpu_custom_call.1} parent=27 // pred_region
          %s206 = smul.u32 2, %s15
          %p207 = scmp.lt.s32.totalorder %s206, 3
          %s208 = scalar_select %p207, %s206, 3
          %s209 = smul.addr %s208, 8
          %s210 = scalar_lea.vmem %s3, %s209
          %s211 = smul.u32 2, %s15
        $region36: #{tpu_custom_call.1} parent=27 // pred_fallthru
          _
      $region28: #{tpu_custom_call.1} parent=5 // pred_fallthru
        _
      %p212 = scmp.le.s32.totalorder 1, %s15
      %p213 = scmp.lt.s32.totalorder %s15, 3
      %p214 = pnand %p212, %p213
      %p215 = pneg %p214
      // Predicated region
      $region37: #{tpu_custom_call.1} parent=5 // pred_check
        _
      $region38: #{tpu_custom_call.1} parent=5 // pred_check_branch
        %217 = sbr.rel (%p214) target = $region40
      $region39: #{tpu_custom_call.1} parent=5 // pred_region
        %s218 = ssub.s32 %s15, 1
        // Predicated region
        $region41: #{tpu_custom_call.1} parent=39 // pred_check
          %p219 = pneg %p130
        $region42: #{tpu_custom_call.1} parent=39 // pred_check_branch
          %221 = sbr.rel (%p219) target = $region44
        $region43: #{tpu_custom_call.1} parent=39 // pred_region
          %222 = dma.done [#allocation3], 12288
        $region44: #{tpu_custom_call.1} parent=39 // pred_fallthru
          _
        %s223 = smul.u32 2, %s20
        %p224 = scmp.lt.s32.totalorder %s223, 3
        %s225 = scalar_select %p224, %s223, 3
        %s226 = smul.addr %s225, 8
        %s227 = scalar_lea.vmem %s0, %s226
        %p228 = pneg %p41
        %p229 = pneg %p38
        %p230 = pneg %p62
        %p231 = pneg %p59
        %p232 = pneg %p83
        %p233 = pneg %p80
        %s234 = smul.u32 2, %s20
        %p235 = scmp.lt.s32.totalorder %s234, 3
        %s236 = scalar_select %p235, %s234, 3
        %s237 = smul.addr %s236, 8
        %s238 = scalar_lea.vmem %s3, %s237
        %p239 = pneg %p109
        %p240 = pneg %p106
        %p241 = pneg %p130
        %p242 = pneg %p127
        %p243 = pneg %p156
        %p244 = pneg %p153
        %s245 = sand.u32 %s143, 1
        %s246 = scalar_lea.sflag [#allocation4], %s245
        %s247 = sand.u32 %s143, 1
        %s248 = smul.addr %s247, 16
        %s249 = scalar_lea.vmem [#allocation5], %s248
        %s250 = smul.u32 2, %s20
        %p251 = scmp.lt.s32.totalorder %s250, 3
        %s252 = scalar_select %p251, %s250, 3
        %s253 = smul.addr %s252, 8
        %s254 = scalar_lea.vmem %s0, %s253
        %s255 = smul.u32 2, %s20
        %s256 = smul.u32 2, %s20
        %p257 = scmp.lt.s32.totalorder %s256, 3
        %s258 = scalar_select %p257, %s256, 3
        %s259 = smul.addr %s258, 8
        %s260 = scalar_lea.vmem %s3, %s259
        %s261 = smul.u32 2, %s20
        %s262 = smul.u32 2, %s20
        %v263 = vld [vmem:[%s254] sm:$0xff]
        %v264 = vld [vmem:[%s254 + $0x8] sm:$0xff]
        %v265 = vld [vmem:[%s1] sm:$0xff]
        %v266 = vld [vmem:[%s1 + $0x8] sm:$0xff]
        %v267 = vld [vmem:[%s1 + $0x10] sm:$0xff]
        %v268 = vld [vmem:[%s1 + $0x18] sm:$0xff]
        %v269 = vld [vmem:[%s2] sm:$0xff]
        %v270 = vld [vmem:[%s2 + $0x8] sm:$0xff]
        %v271 = vld [vmem:[%s2 + $0x10] sm:$0xff]
        %v272 = vld [vmem:[%s2 + $0x18] sm:$0xff]
        %274 = vset.pattern.permute.xlu0 0
        %275 = vperm.xlu0 %274, %v269
        %v276 = vpop.permute.xlu0 %275
        %279 = vset.pattern.permute.xlu0 0
        %280 = vperm.xlu0 %279, %v270
        %v281 = vpop.permute.xlu0 %280
        %284 = vset.pattern.permute.xlu0 0
        %285 = vperm.xlu0 %284, %v271
        %v286 = vpop.permute.xlu0 %285
        %289 = vset.pattern.permute.xlu0 0
        %290 = vperm.xlu0 %289, %v272
        %v291 = vpop.permute.xlu0 %290
        %v293 = vmul.f32 %v276, %v265
        %v294 = vmul.f32 %v281, %v266
        %v295 = vmul.f32 %v286, %v267
        %v296 = vmul.f32 %v291, %v268
        %vm297 = vcmask 261120
        %v299 = vsel %vm297, %v263, 0
        %v302 = vsel %vm297, %v264, 0
        %304 = vmatprep.subr.mxu0 0.0
        %305 = vmatpush1.msra.mxu0 0.0
        %306 = vmatprep.subr.mxu0 0.0
        %307 = vmatpush1.msra.mxu0 0.0
        %308 = vmatprep.subr.mxu0 0.0
        %309 = vmatpush1.msra.mxu0 0.0
        %310 = vmatprep.subr.mxu0 0.0
        %311 = vmatpush1.msra.mxu0 0.0
        %312 = vmatprep.subr.mxu0 0.0
        %313 = vmatpush1.msra.mxu0 0.0
        %314 = vmatprep.subr.mxu0 0.0
        %315 = vmatpush1.msra.mxu0 0.0
        %316 = vmatprep.subr.mxu0 0.0
        %317 = vmatpush1.msra.mxu0 0.0
        %318 = vmatprep.subr.mxu0 0.0
        %319 = vmatpush1.msra.mxu0 0.0
        %320 = vmatprep.subr.mxu0 0.0
        %321 = vmatpush1.msra.mxu0 0.0
        %322 = vmatprep.subr.mxu0 0.0
        %323 = vmatpush1.msra.mxu0 0.0
        %324 = vmatprep.subr.mxu0 0.0
        %325 = vmatpush1.msra.mxu0 0.0
        %326 = vmatprep.subr.mxu0 0.0
        %327 = vmatpush1.msra.mxu0 0.0
        %328 = vmatprep.subr.mxu0 0.0
        %329 = vmatpush1.msra.mxu0 %v296
        %330 = vmatprep.subr.mxu0 0.0
        %331 = vmatpush1.msra.mxu0 %v295
        %332 = vmatprep.subr.mxu0 0.0
        %333 = vmatpush1.msra.mxu0 %v294
        %334 = vmatprep.subr.mxu0 0.0
        %335 = vmatpush1.msra.mxu0 %v293
        %336 = vmatprep.subr.mxu0 0.0
        %337 = vmatpush2.msra.mxu0 0.0
        %338 = vmatprep.subr.mxu0 0.0
        %339 = vmatpush2.msra.mxu0 0.0
        %340 = vmatprep.subr.mxu0 0.0
        %341 = vmatpush2.msra.mxu0 0.0
        %342 = vmatprep.subr.mxu0 0.0
        %343 = vmatpush2.msra.mxu0 0.0
        %344 = vmatprep.subr.mxu0 0.0
        %345 = vmatpush2.msra.mxu0 0.0
        %346 = vmatprep.subr.mxu0 0.0
        %347 = vmatpush2.msra.mxu0 0.0
        %348 = vmatprep.subr.mxu0 0.0
        %349 = vmatpush2.msra.mxu0 0.0
        %350 = vmatprep.subr.mxu0 0.0
        %351 = vmatpush2.msra.mxu0 0.0
        %352 = vmatprep.subr.mxu0 0.0
        %353 = vmatpush2.msra.mxu0 0.0
        %354 = vmatprep.subr.mxu0 0.0
        %355 = vmatpush2.msra.mxu0 0.0
        %356 = vmatprep.subr.mxu0 0.0
        %357 = vmatpush2.msra.mxu0 0.0
        %358 = vmatprep.subr.mxu0 0.0
        %359 = vmatpush2.msra.mxu0 0.0
        %360 = vmatprep.subr.mxu0 0.0
        %361 = vmatpush2.msra.mxu0 0.0
        %362 = vmatprep.subr.mxu0 0.0
        %363 = vmatpush2.msra.mxu0 0.0
        %364 = vmatprep.subr.mxu0 0.0
        %365 = vmatpush2.msra.mxu0 0.0
        %366 = vmatprep.subr.mxu0 0.0
        %367 = vmatpush2.msra.mxu0 0.0
        %368 = vmatprep.mubr.f32.mxu0 0.0
        %369 = vmatmul.mubr.f32.gmra.mxu0 %v299
        %v370 = vpop.f32.mrf.mxu0
        %v371 = vadd.f32 0.0, %v370
        %v372 = vpop.f32.mrf.mxu0
        %373 = vmatprep.mubr.f32.mxu0 0.0
        %374 = vmatmul.mubr.f32.gmra.mxu0 %v302
        %v375 = vpop.f32.mrf.mxu0
        %v376 = vadd.f32 0.0, %v375
        %v377 = vpop.f32.mrf.mxu0
        %378 = vdwg.mxu0
        %379 = vset.pattern.permute.xlu0 1
        %380 = vperm.xlu0 %379, %v269
        %v381 = vpop.permute.xlu0 %380
        %383 = vset.pattern.permute.xlu0 1
        %384 = vperm.xlu0 %383, %v270
        %v385 = vpop.permute.xlu0 %384
        %387 = vset.pattern.permute.xlu0 1
        %388 = vperm.xlu0 %387, %v271
        %v389 = vpop.permute.xlu0 %388
        %391 = vset.pattern.permute.xlu0 1
        %392 = vperm.xlu0 %391, %v272
        %v393 = vpop.permute.xlu0 %392
        %v395 = vmul.f32 %v381, %v265
        %v396 = vmul.f32 %v385, %v266
        %v397 = vmul.f32 %v389, %v267
        %v398 = vmul.f32 %v393, %v268
        %399 = vmatprep.subr.mxu0 0.0
        %400 = vmatpush1.msra.mxu0 0.0
        %401 = vmatprep.subr.mxu0 0.0
        %402 = vmatpush1.msra.mxu0 0.0
        %403 = vmatprep.subr.mxu0 0.0
        %404 = vmatpush1.msra.mxu0 0.0
        %405 = vmatprep.subr.mxu0 0.0
        %406 = vmatpush1.msra.mxu0 0.0
        %407 = vmatprep.subr.mxu0 0.0
        %408 = vmatpush1.msra.mxu0 0.0
        %409 = vmatprep.subr.mxu0 0.0
        %410 = vmatpush1.msra.mxu0 0.0
        %411 = vmatprep.subr.mxu0 0.0
        %412 = vmatpush1.msra.mxu0 0.0
        %413 = vmatprep.subr.mxu0 0.0
        %414 = vmatpush1.msra.mxu0 0.0
        %415 = vmatprep.subr.mxu0 0.0
        %416 = vmatpush1.msra.mxu0 0.0
        %417 = vmatprep.subr.mxu0 0.0
        %418 = vmatpush1.msra.mxu0 0.0
        %419 = vmatprep.subr.mxu0 0.0
        %420 = vmatpush1.msra.mxu0 0.0
        %421 = vmatprep.subr.mxu0 0.0
        %422 = vmatpush1.msra.mxu0 0.0
        %423 = vmatprep.subr.mxu0 0.0
        %424 = vmatpush1.msra.mxu0 %v398
        %425 = vmatprep.subr.mxu0 0.0
        %426 = vmatpush1.msra.mxu0 %v397
        %427 = vmatprep.subr.mxu0 0.0
        %428 = vmatpush1.msra.mxu0 %v396
        %429 = vmatprep.subr.mxu0 0.0
        %430 = vmatpush1.msra.mxu0 %v395
        %431 = vmatprep.subr.mxu0 0.0
        %432 = vmatpush2.msra.mxu0 0.0
        %433 = vmatprep.subr.mxu0 0.0
        %434 = vmatpush2.msra.mxu0 0.0
        %435 = vmatprep.subr.mxu0 0.0
        %436 = vmatpush2.msra.mxu0 0.0
        %437 = vmatprep.subr.mxu0 0.0
        %438 = vmatpush2.msra.mxu0 0.0
        %439 = vmatprep.subr.mxu0 0.0
        %440 = vmatpush2.msra.mxu0 0.0
        %441 = vmatprep.subr.mxu0 0.0
        %442 = vmatpush2.msra.mxu0 0.0
        %443 = vmatprep.subr.mxu0 0.0
        %444 = vmatpush2.msra.mxu0 0.0
        %445 = vmatprep.subr.mxu0 0.0
        %446 = vmatpush2.msra.mxu0 0.0
        %447 = vmatprep.subr.mxu0 0.0
        %448 = vmatpush2.msra.mxu0 0.0
        %449 = vmatprep.subr.mxu0 0.0
        %450 = vmatpush2.msra.mxu0 0.0
        %451 = vmatprep.subr.mxu0 0.0
        %452 = vmatpush2.msra.mxu0 0.0
        %453 = vmatprep.subr.mxu0 0.0
        %454 = vmatpush2.msra.mxu0 0.0
        %455 = vmatprep.subr.mxu0 0.0
        %456 = vmatpush2.msra.mxu0 0.0
        %457 = vmatprep.subr.mxu0 0.0
        %458 = vmatpush2.msra.mxu0 0.0
        %459 = vmatprep.subr.mxu0 0.0
        %460 = vmatpush2.msra.mxu0 0.0
        %461 = vmatprep.subr.mxu0 0.0
        %462 = vmatpush2.msra.mxu0 0.0
        %463 = vmatprep.mubr.f32.mxu0 0.0
        %464 = vmatmul.mubr.f32.gmra.mxu0 %v299
        %v465 = vpop.f32.mrf.mxu0
        %v466 = vadd.f32 0.0, %v465
        %v467 = vpop.f32.mrf.mxu0
        %468 = vmatprep.mubr.f32.mxu0 0.0
        %469 = vmatmul.mubr.f32.gmra.mxu0 %v302
        %v470 = vpop.f32.mrf.mxu0
        %v471 = vadd.f32 0.0, %v470
        %v472 = vpop.f32.mrf.mxu0
        %473 = vdwg.mxu0
        %474 = vset.pattern.permute.xlu0 2
        %475 = vperm.xlu0 %474, %v269
        %v476 = vpop.permute.xlu0 %475
        %478 = vset.pattern.permute.xlu0 2
        %479 = vperm.xlu0 %478, %v270
        %v480 = vpop.permute.xlu0 %479
        %482 = vset.pattern.permute.xlu0 2
        %483 = vperm.xlu0 %482, %v271
        %v484 = vpop.permute.xlu0 %483
        %486 = vset.pattern.permute.xlu0 2
        %487 = vperm.xlu0 %486, %v272
        %v488 = vpop.permute.xlu0 %487
        %v490 = vmul.f32 %v476, %v265
        %v491 = vmul.f32 %v480, %v266
        %v492 = vmul.f32 %v484, %v267
        %v493 = vmul.f32 %v488, %v268
        %494 = vmatprep.subr.mxu0 0.0
        %495 = vmatpush1.msra.mxu0 0.0
        %496 = vmatprep.subr.mxu0 0.0
        %497 = vmatpush1.msra.mxu0 0.0
        %498 = vmatprep.subr.mxu0 0.0
        %499 = vmatpush1.msra.mxu0 0.0
        %500 = vmatprep.subr.mxu0 0.0
        %501 = vmatpush1.msra.mxu0 0.0
        %502 = vmatprep.subr.mxu0 0.0
        %503 = vmatpush1.msra.mxu0 0.0
        %504 = vmatprep.subr.mxu0 0.0
        %505 = vmatpush1.msra.mxu0 0.0
        %506 = vmatprep.subr.mxu0 0.0
        %507 = vmatpush1.msra.mxu0 0.0
        %508 = vmatprep.subr.mxu0 0.0
        %509 = vmatpush1.msra.mxu0 0.0
        %510 = vmatprep.subr.mxu0 0.0
        %511 = vmatpush1.msra.mxu0 0.0
        %512 = vmatprep.subr.mxu0 0.0
        %513 = vmatpush1.msra.mxu0 0.0
        %514 = vmatprep.subr.mxu0 0.0
        %515 = vmatpush1.msra.mxu0 0.0
        %516 = vmatprep.subr.mxu0 0.0
        %517 = vmatpush1.msra.mxu0 0.0
        %518 = vmatprep.subr.mxu0 0.0
        %519 = vmatpush1.msra.mxu0 %v493
        %520 = vmatprep.subr.mxu0 0.0
        %521 = vmatpush1.msra.mxu0 %v492
        %522 = vmatprep.subr.mxu0 0.0
        %523 = vmatpush1.msra.mxu0 %v491
        %524 = vmatprep.subr.mxu0 0.0
        %525 = vmatpush1.msra.mxu0 %v490
        %526 = vmatprep.subr.mxu0 0.0
        %527 = vmatpush2.msra.mxu0 0.0
        %528 = vmatprep.subr.mxu0 0.0
        %529 = vmatpush2.msra.mxu0 0.0
        %530 = vmatprep.subr.mxu0 0.0
        %531 = vmatpush2.msra.mxu0 0.0
        %532 = vmatprep.subr.mxu0 0.0
        %533 = vmatpush2.msra.mxu0 0.0
        %534 = vmatprep.subr.mxu0 0.0
        %535 = vmatpush2.msra.mxu0 0.0
        %536 = vmatprep.subr.mxu0 0.0
        %537 = vmatpush2.msra.mxu0 0.0
        %538 = vmatprep.subr.mxu0 0.0
        %539 = vmatpush2.msra.mxu0 0.0
        %540 = vmatprep.subr.mxu0 0.0
        %541 = vmatpush2.msra.mxu0 0.0
        %542 = vmatprep.subr.mxu0 0.0
        %543 = vmatpush2.msra.mxu0 0.0
        %544 = vmatprep.subr.mxu0 0.0
        %545 = vmatpush2.msra.mxu0 0.0
        %546 = vmatprep.subr.mxu0 0.0
        %547 = vmatpush2.msra.mxu0 0.0
        %548 = vmatprep.subr.mxu0 0.0
        %549 = vmatpush2.msra.mxu0 0.0
        %550 = vmatprep.subr.mxu0 0.0
        %551 = vmatpush2.msra.mxu0 0.0
        %552 = vmatprep.subr.mxu0 0.0
        %553 = vmatpush2.msra.mxu0 0.0
        %554 = vmatprep.subr.mxu0 0.0
        %555 = vmatpush2.msra.mxu0 0.0
        %556 = vmatprep.subr.mxu0 0.0
        %557 = vmatpush2.msra.mxu0 0.0
        %558 = vmatprep.mubr.f32.mxu0 0.0
        %559 = vmatmul.mubr.f32.gmra.mxu0 %v299
        %v560 = vpop.f32.mrf.mxu0
        %v561 = vadd.f32 0.0, %v560
        %v562 = vpop.f32.mrf.mxu0
        %563 = vmatprep.mubr.f32.mxu0 0.0
        %564 = vmatmul.mubr.f32.gmra.mxu0 %v302
        %v565 = vpop.f32.mrf.mxu0
        %v566 = vadd.f32 0.0, %v565
        %v567 = vpop.f32.mrf.mxu0
        %568 = vdwg.mxu0
        %v569 = vld [vmem:[#allocation2] sm:$0xff]
        %v570 = vld [vmem:[#allocation2 + $0x8] sm:$0xff]
        %v571 = vld [vmem:[#allocation2 + $0x10] sm:$0xff]
        %v572 = vld [vmem:[#allocation2 + $0x18] sm:$0xff]
        %v573 = vld [vmem:[#allocation2 + $0x20] sm:$0xff]
        %v574 = vld [vmem:[#allocation2 + $0x28] sm:$0xff]
        %v575 = vld [vmem:[#allocation2 + $0x30] sm:$0xff]
        %v576 = vld [vmem:[#allocation2 + $0x38] sm:$0xff]
        %v577 = vld [vmem:[#allocation2 + $0x40] sm:$0xff]
        %v578 = vld [vmem:[#allocation2 + $0x48] sm:$0xff]
        %v579 = vld [vmem:[#allocation2 + $0x50] sm:$0xff]
        %v580 = vld [vmem:[#allocation2 + $0x58] sm:$0xff]
        %v581 = vld [vmem:[#allocation2 + $0x60] sm:$0xff]
        %v582 = vld [vmem:[#allocation2 + $0x68] sm:$0xff]
        %v583 = vld [vmem:[#allocation2 + $0x70] sm:$0xff]
        %v584 = vld [vmem:[#allocation2 + $0x78] sm:$0xff]
        %585 = vmatprep.subr.mxu0 0.0
        %586 = vmatpush1.msra.mxu0 %v584
        %587 = vmatprep.subr.mxu0 0.0
        %588 = vmatpush1.msra.mxu0 %v583
        %589 = vmatprep.subr.mxu0 0.0
        %590 = vmatpush1.msra.mxu0 %v582
        %591 = vmatprep.subr.mxu0 0.0
        %592 = vmatpush1.msra.mxu0 %v581
        %593 = vmatprep.subr.mxu0 0.0
        %594 = vmatpush1.msra.mxu0 %v580
        %595 = vmatprep.subr.mxu0 0.0
        %596 = vmatpush1.msra.mxu0 %v579
        %597 = vmatprep.subr.mxu0 0.0
        %598 = vmatpush1.msra.mxu0 %v578
        %599 = vmatprep.subr.mxu0 0.0
        %600 = vmatpush1.msra.mxu0 %v577
        %601 = vmatprep.subr.mxu0 0.0
        %602 = vmatpush1.msra.mxu0 %v576
        %603 = vmatprep.subr.mxu0 0.0
        %604 = vmatpush1.msra.mxu0 %v575
        %605 = vmatprep.subr.mxu0 0.0
        %606 = vmatpush1.msra.mxu0 %v574
        %607 = vmatprep.subr.mxu0 0.0
        %608 = vmatpush1.msra.mxu0 %v573
        %609 = vmatprep.subr.mxu0 0.0
        %610 = vmatpush1.msra.mxu0 %v572
        %611 = vmatprep.subr.mxu0 0.0
        %612 = vmatpush1.msra.mxu0 %v571
        %613 = vmatprep.subr.mxu0 0.0
        %614 = vmatpush1.msra.mxu0 %v570
        %615 = vmatprep.subr.mxu0 0.0
        %616 = vmatpush1.msra.mxu0 %v569
        %617 = vmatprep.subr.mxu0 0.0
        %618 = vmatpush2.msra.mxu0 0.0
        %619 = vmatprep.subr.mxu0 0.0
        %620 = vmatpush2.msra.mxu0 0.0
        %621 = vmatprep.subr.mxu0 0.0
        %622 = vmatpush2.msra.mxu0 0.0
        %623 = vmatprep.subr.mxu0 0.0
        %624 = vmatpush2.msra.mxu0 0.0
        %625 = vmatprep.subr.mxu0 0.0
        %626 = vmatpush2.msra.mxu0 0.0
        %627 = vmatprep.subr.mxu0 0.0
        %628 = vmatpush2.msra.mxu0 0.0
        %629 = vmatprep.subr.mxu0 0.0
        %630 = vmatpush2.msra.mxu0 0.0
        %631 = vmatprep.subr.mxu0 0.0
        %632 = vmatpush2.msra.mxu0 0.0
        %633 = vmatprep.subr.mxu0 0.0
        %634 = vmatpush2.msra.mxu0 0.0
        %635 = vmatprep.subr.mxu0 0.0
        %636 = vmatpush2.msra.mxu0 0.0
        %637 = vmatprep.subr.mxu0 0.0
        %638 = vmatpush2.msra.mxu0 0.0
        %639 = vmatprep.subr.mxu0 0.0
        %640 = vmatpush2.msra.mxu0 0.0
        %641 = vmatprep.subr.mxu0 0.0
        %642 = vmatpush2.msra.mxu0 0.0
        %643 = vmatprep.subr.mxu0 0.0
        %644 = vmatpush2.msra.mxu0 0.0
        %645 = vmatprep.subr.mxu0 0.0
        %646 = vmatpush2.msra.mxu0 0.0
        %647 = vmatprep.subr.mxu0 0.0
        %648 = vmatpush2.msra.mxu0 0.0
        %649 = vmatprep.mubr.f32.mxu0 0.0
        %650 = vmatmul.mubr.f32.gmra.mxu0 %v371
        %v651 = vpop.f32.mrf.mxu0
        %v652 = vadd.f32 0.0, %v651
        %v653 = vpop.f32.mrf.mxu0
        %654 = vmatprep.mubr.f32.mxu0 0.0
        %655 = vmatmul.mubr.f32.gmra.mxu0 %v376
        %v656 = vpop.f32.mrf.mxu0
        %v657 = vadd.f32 0.0, %v656
        %v658 = vpop.f32.mrf.mxu0
        %659 = vdwg.mxu0
        %v660 = vld [vmem:[%s260] sm:$0xff]
        %v661 = vld [vmem:[%s260 + $0x8] sm:$0xff]
        %663 = vset.pattern.permute.xlu0 0
        %664 = vperm.xlu0 %663, %v660
        %v665 = vpop.permute.xlu0 %664
        %668 = vset.pattern.permute.xlu0 0
        %669 = vperm.xlu0 %668, %v661
        %v670 = vpop.permute.xlu0 %669
        %v672 = vmul.f32 %v665, %v652
        %v673 = vmul.f32 %v670, %v657
        %v674 = vadd.f32 %v672, 0.0
        %v675 = vadd.f32 %v673, 0.0
        %s676 = scalar_lea.vmem [#allocation2], 128
        %v677 = vld [vmem:[%s676] sm:$0xff]
        %v678 = vld [vmem:[%s676 + $0x8] sm:$0xff]
        %v679 = vld [vmem:[%s676 + $0x10] sm:$0xff]
        %v680 = vld [vmem:[%s676 + $0x18] sm:$0xff]
        %v681 = vld [vmem:[%s676 + $0x20] sm:$0xff]
        %v682 = vld [vmem:[%s676 + $0x28] sm:$0xff]
        %v683 = vld [vmem:[%s676 + $0x30] sm:$0xff]
        %v684 = vld [vmem:[%s676 + $0x38] sm:$0xff]
        %v685 = vld [vmem:[%s676 + $0x40] sm:$0xff]
        %v686 = vld [vmem:[%s676 + $0x48] sm:$0xff]
        %v687 = vld [vmem:[%s676 + $0x50] sm:$0xff]
        %v688 = vld [vmem:[%s676 + $0x58] sm:$0xff]
        %v689 = vld [vmem:[%s676 + $0x60] sm:$0xff]
        %v690 = vld [vmem:[%s676 + $0x68] sm:$0xff]
        %v691 = vld [vmem:[%s676 + $0x70] sm:$0xff]
        %v692 = vld [vmem:[%s676 + $0x78] sm:$0xff]
        %693 = vmatprep.subr.mxu0 0.0
        %694 = vmatpush1.msra.mxu0 %v692
        %695 = vmatprep.subr.mxu0 0.0
        %696 = vmatpush1.msra.mxu0 %v691
        %697 = vmatprep.subr.mxu0 0.0
        %698 = vmatpush1.msra.mxu0 %v690
        %699 = vmatprep.subr.mxu0 0.0
        %700 = vmatpush1.msra.mxu0 %v689
        %701 = vmatprep.subr.mxu0 0.0
        %702 = vmatpush1.msra.mxu0 %v688
        %703 = vmatprep.subr.mxu0 0.0
        %704 = vmatpush1.msra.mxu0 %v687
        %705 = vmatprep.subr.mxu0 0.0
        %706 = vmatpush1.msra.mxu0 %v686
        %707 = vmatprep.subr.mxu0 0.0
        %708 = vmatpush1.msra.mxu0 %v685
        %709 = vmatprep.subr.mxu0 0.0
        %710 = vmatpush1.msra.mxu0 %v684
        %711 = vmatprep.subr.mxu0 0.0
        %712 = vmatpush1.msra.mxu0 %v683
        %713 = vmatprep.subr.mxu0 0.0
        %714 = vmatpush1.msra.mxu0 %v682
        %715 = vmatprep.subr.mxu0 0.0
        %716 = vmatpush1.msra.mxu0 %v681
        %717 = vmatprep.subr.mxu0 0.0
        %718 = vmatpush1.msra.mxu0 %v680
        %719 = vmatprep.subr.mxu0 0.0
        %720 = vmatpush1.msra.mxu0 %v679
        %721 = vmatprep.subr.mxu0 0.0
        %722 = vmatpush1.msra.mxu0 %v678
        %723 = vmatprep.subr.mxu0 0.0
        %724 = vmatpush1.msra.mxu0 %v677
        %725 = vmatprep.subr.mxu0 0.0
        %726 = vmatpush2.msra.mxu0 0.0
        %727 = vmatprep.subr.mxu0 0.0
        %728 = vmatpush2.msra.mxu0 0.0
        %729 = vmatprep.subr.mxu0 0.0
        %730 = vmatpush2.msra.mxu0 0.0
        %731 = vmatprep.subr.mxu0 0.0
        %732 = vmatpush2.msra.mxu0 0.0
        %733 = vmatprep.subr.mxu0 0.0
        %734 = vmatpush2.msra.mxu0 0.0
        %735 = vmatprep.subr.mxu0 0.0
        %736 = vmatpush2.msra.mxu0 0.0
        %737 = vmatprep.subr.mxu0 0.0
        %738 = vmatpush2.msra.mxu0 0.0
        %739 = vmatprep.subr.mxu0 0.0
        %740 = vmatpush2.msra.mxu0 0.0
        %741 = vmatprep.subr.mxu0 0.0
        %742 = vmatpush2.msra.mxu0 0.0
        %743 = vmatprep.subr.mxu0 0.0
        %744 = vmatpush2.msra.mxu0 0.0
        %745 = vmatprep.subr.mxu0 0.0
        %746 = vmatpush2.msra.mxu0 0.0
        %747 = vmatprep.subr.mxu0 0.0
        %748 = vmatpush2.msra.mxu0 0.0
        %749 = vmatprep.subr.mxu0 0.0
        %750 = vmatpush2.msra.mxu0 0.0
        %751 = vmatprep.subr.mxu0 0.0
        %752 = vmatpush2.msra.mxu0 0.0
        %753 = vmatprep.subr.mxu0 0.0
        %754 = vmatpush2.msra.mxu0 0.0
        %755 = vmatprep.subr.mxu0 0.0
        %756 = vmatpush2.msra.mxu0 0.0
        %757 = vmatprep.mubr.f32.mxu0 0.0
        %758 = vmatmul.mubr.f32.gmra.mxu0 %v466
        %v759 = vpop.f32.mrf.mxu0
        %v760 = vadd.f32 0.0, %v759
        %v761 = vpop.f32.mrf.mxu0
        %762 = vmatprep.mubr.f32.mxu0 0.0
        %763 = vmatmul.mubr.f32.gmra.mxu0 %v471
        %v764 = vpop.f32.mrf.mxu0
        %v765 = vadd.f32 0.0, %v764
        %v766 = vpop.f32.mrf.mxu0
        %767 = vdwg.mxu0
        %768 = vset.pattern.permute.xlu0 1
        %769 = vperm.xlu0 %768, %v660
        %v770 = vpop.permute.xlu0 %769
        %772 = vset.pattern.permute.xlu0 1
        %773 = vperm.xlu0 %772, %v661
        %v774 = vpop.permute.xlu0 %773
        %v776 = vmul.f32 %v770, %v760
        %v777 = vmul.f32 %v774, %v765
        %v778 = vadd.f32 %v674, %v776
        %v779 = vadd.f32 %v675, %v777
        %s780 = scalar_lea.vmem [#allocation2], 256
        %v781 = vld [vmem:[%s780] sm:$0xff]
        %v782 = vld [vmem:[%s780 + $0x8] sm:$0xff]
        %v783 = vld [vmem:[%s780 + $0x10] sm:$0xff]
        %v784 = vld [vmem:[%s780 + $0x18] sm:$0xff]
        %v785 = vld [vmem:[%s780 + $0x20] sm:$0xff]
        %v786 = vld [vmem:[%s780 + $0x28] sm:$0xff]
        %v787 = vld [vmem:[%s780 + $0x30] sm:$0xff]
        %v788 = vld [vmem:[%s780 + $0x38] sm:$0xff]
        %v789 = vld [vmem:[%s780 + $0x40] sm:$0xff]
        %v790 = vld [vmem:[%s780 + $0x48] sm:$0xff]
        %v791 = vld [vmem:[%s780 + $0x50] sm:$0xff]
        %v792 = vld [vmem:[%s780 + $0x58] sm:$0xff]
        %v793 = vld [vmem:[%s780 + $0x60] sm:$0xff]
        %v794 = vld [vmem:[%s780 + $0x68] sm:$0xff]
        %v795 = vld [vmem:[%s780 + $0x70] sm:$0xff]
        %v796 = vld [vmem:[%s780 + $0x78] sm:$0xff]
        %797 = vmatprep.subr.mxu0 0.0
        %798 = vmatpush1.msra.mxu0 %v796
        %799 = vmatprep.subr.mxu0 0.0
        %800 = vmatpush1.msra.mxu0 %v795
        %801 = vmatprep.subr.mxu0 0.0
        %802 = vmatpush1.msra.mxu0 %v794
        %803 = vmatprep.subr.mxu0 0.0
        %804 = vmatpush1.msra.mxu0 %v793
        %805 = vmatprep.subr.mxu0 0.0
        %806 = vmatpush1.msra.mxu0 %v792
        %807 = vmatprep.subr.mxu0 0.0
        %808 = vmatpush1.msra.mxu0 %v791
        %809 = vmatprep.subr.mxu0 0.0
        %810 = vmatpush1.msra.mxu0 %v790
        %811 = vmatprep.subr.mxu0 0.0
        %812 = vmatpush1.msra.mxu0 %v789
        %813 = vmatprep.subr.mxu0 0.0
        %814 = vmatpush1.msra.mxu0 %v788
        %815 = vmatprep.subr.mxu0 0.0
        %816 = vmatpush1.msra.mxu0 %v787
        %817 = vmatprep.subr.mxu0 0.0
        %818 = vmatpush1.msra.mxu0 %v786
        %819 = vmatprep.subr.mxu0 0.0
        %820 = vmatpush1.msra.mxu0 %v785
        %821 = vmatprep.subr.mxu0 0.0
        %822 = vmatpush1.msra.mxu0 %v784
        %823 = vmatprep.subr.mxu0 0.0
        %824 = vmatpush1.msra.mxu0 %v783
        %825 = vmatprep.subr.mxu0 0.0
        %826 = vmatpush1.msra.mxu0 %v782
        %827 = vmatprep.subr.mxu0 0.0
        %828 = vmatpush1.msra.mxu0 %v781
        %829 = vmatprep.subr.mxu0 0.0
        %830 = vmatpush2.msra.mxu0 0.0
        %831 = vmatprep.subr.mxu0 0.0
        %832 = vmatpush2.msra.mxu0 0.0
        %833 = vmatprep.subr.mxu0 0.0
        %834 = vmatpush2.msra.mxu0 0.0
        %835 = vmatprep.subr.mxu0 0.0
        %836 = vmatpush2.msra.mxu0 0.0
        %837 = vmatprep.subr.mxu0 0.0
        %838 = vmatpush2.msra.mxu0 0.0
        %839 = vmatprep.subr.mxu0 0.0
        %840 = vmatpush2.msra.mxu0 0.0
        %841 = vmatprep.subr.mxu0 0.0
        %842 = vmatpush2.msra.mxu0 0.0
        %843 = vmatprep.subr.mxu0 0.0
        %844 = vmatpush2.msra.mxu0 0.0
        %845 = vmatprep.subr.mxu0 0.0
        %846 = vmatpush2.msra.mxu0 0.0
        %847 = vmatprep.subr.mxu0 0.0
        %848 = vmatpush2.msra.mxu0 0.0
        %849 = vmatprep.subr.mxu0 0.0
        %850 = vmatpush2.msra.mxu0 0.0
        %851 = vmatprep.subr.mxu0 0.0
        %852 = vmatpush2.msra.mxu0 0.0
        %853 = vmatprep.subr.mxu0 0.0
        %854 = vmatpush2.msra.mxu0 0.0
        %855 = vmatprep.subr.mxu0 0.0
        %856 = vmatpush2.msra.mxu0 0.0
        %857 = vmatprep.subr.mxu0 0.0
        %858 = vmatpush2.msra.mxu0 0.0
        %859 = vmatprep.subr.mxu0 0.0
        %860 = vmatpush2.msra.mxu0 0.0
        %861 = vmatprep.mubr.f32.mxu0 0.0
        %862 = vmatmul.mubr.f32.gmra.mxu0 %v561
        %v863 = vpop.f32.mrf.mxu0
        %v864 = vadd.f32 0.0, %v863
        %v865 = vpop.f32.mrf.mxu0
        %866 = vmatprep.mubr.f32.mxu0 0.0
        %867 = vmatmul.mubr.f32.gmra.mxu0 %v566
        %v868 = vpop.f32.mrf.mxu0
        %v869 = vadd.f32 0.0, %v868
        %v870 = vpop.f32.mrf.mxu0
        %871 = vdwg.mxu0
        %872 = vset.pattern.permute.xlu0 2
        %873 = vperm.xlu0 %872, %v660
        %v874 = vpop.permute.xlu0 %873
        %876 = vset.pattern.permute.xlu0 2
        %877 = vperm.xlu0 %876, %v661
        %v878 = vpop.permute.xlu0 %877
        %v880 = vmul.f32 %v874, %v864
        %v881 = vmul.f32 %v878, %v869
        %v882 = vadd.f32 %v778, %v880
        %v883 = vadd.f32 %v779, %v881
        %s884 = scalar_lea.vmem [#allocation2], 384
        %v885 = vld [vmem:[%s884] sm:$0xff]
        %v886 = vld [vmem:[%s884 + $0x8] sm:$0xff]
        %v887 = vld [vmem:[%s884 + $0x10] sm:$0xff]
        %v888 = vld [vmem:[%s884 + $0x18] sm:$0xff]
        %v889 = vld [vmem:[%s884 + $0x20] sm:$0xff]
        %v890 = vld [vmem:[%s884 + $0x28] sm:$0xff]
        %v891 = vld [vmem:[%s884 + $0x30] sm:$0xff]
        %v892 = vld [vmem:[%s884 + $0x38] sm:$0xff]
        %v893 = vld [vmem:[%s884 + $0x40] sm:$0xff]
        %v894 = vld [vmem:[%s884 + $0x48] sm:$0xff]
        %v895 = vld [vmem:[%s884 + $0x50] sm:$0xff]
        %v896 = vld [vmem:[%s884 + $0x58] sm:$0xff]
        %v897 = vld [vmem:[%s884 + $0x60] sm:$0xff]
        %v898 = vld [vmem:[%s884 + $0x68] sm:$0xff]
        %v899 = vld [vmem:[%s884 + $0x70] sm:$0xff]
        %v900 = vld [vmem:[%s884 + $0x78] sm:$0xff]
        %901 = vmatprep.subr.mxu0 0.0
        %902 = vmatpush1.msra.mxu0 %v900
        %903 = vmatprep.subr.mxu0 0.0
        %904 = vmatpush1.msra.mxu0 %v899
        %905 = vmatprep.subr.mxu0 0.0
        %906 = vmatpush1.msra.mxu0 %v898
        %907 = vmatprep.subr.mxu0 0.0
        %908 = vmatpush1.msra.mxu0 %v897
        %909 = vmatprep.subr.mxu0 0.0
        %910 = vmatpush1.msra.mxu0 %v896
        %911 = vmatprep.subr.mxu0 0.0
        %912 = vmatpush1.msra.mxu0 %v895
        %913 = vmatprep.subr.mxu0 0.0
        %914 = vmatpush1.msra.mxu0 %v894
        %915 = vmatprep.subr.mxu0 0.0
        %916 = vmatpush1.msra.mxu0 %v893
        %917 = vmatprep.subr.mxu0 0.0
        %918 = vmatpush1.msra.mxu0 %v892
        %919 = vmatprep.subr.mxu0 0.0
        %920 = vmatpush1.msra.mxu0 %v891
        %921 = vmatprep.subr.mxu0 0.0
        %922 = vmatpush1.msra.mxu0 %v890
        %923 = vmatprep.subr.mxu0 0.0
        %924 = vmatpush1.msra.mxu0 %v889
        %925 = vmatprep.subr.mxu0 0.0
        %926 = vmatpush1.msra.mxu0 %v888
        %927 = vmatprep.subr.mxu0 0.0
        %928 = vmatpush1.msra.mxu0 %v887
        %929 = vmatprep.subr.mxu0 0.0
        %930 = vmatpush1.msra.mxu0 %v886
        %931 = vmatprep.subr.mxu0 0.0
        %932 = vmatpush1.msra.mxu0 %v885
        %933 = vmatprep.subr.mxu0 0.0
        %934 = vmatpush2.msra.mxu0 0.0
        %935 = vmatprep.subr.mxu0 0.0
        %936 = vmatpush2.msra.mxu0 0.0
        %937 = vmatprep.subr.mxu0 0.0
        %938 = vmatpush2.msra.mxu0 0.0
        %939 = vmatprep.subr.mxu0 0.0
        %940 = vmatpush2.msra.mxu0 0.0
        %941 = vmatprep.subr.mxu0 0.0
        %942 = vmatpush2.msra.mxu0 0.0
        %943 = vmatprep.subr.mxu0 0.0
        %944 = vmatpush2.msra.mxu0 0.0
        %945 = vmatprep.subr.mxu0 0.0
        %946 = vmatpush2.msra.mxu0 0.0
        %947 = vmatprep.subr.mxu0 0.0
        %948 = vmatpush2.msra.mxu0 0.0
        %949 = vmatprep.subr.mxu0 0.0
        %950 = vmatpush2.msra.mxu0 0.0
        %951 = vmatprep.subr.mxu0 0.0
        %952 = vmatpush2.msra.mxu0 0.0
        %953 = vmatprep.subr.mxu0 0.0
        %954 = vmatpush2.msra.mxu0 0.0
        %955 = vmatprep.subr.mxu0 0.0
        %956 = vmatpush2.msra.mxu0 0.0
        %957 = vmatprep.subr.mxu0 0.0
        %958 = vmatpush2.msra.mxu0 0.0
        %959 = vmatprep.subr.mxu0 0.0
        %960 = vmatpush2.msra.mxu0 0.0
        %961 = vmatprep.subr.mxu0 0.0
        %962 = vmatpush2.msra.mxu0 0.0
        %963 = vmatprep.subr.mxu0 0.0
        %964 = vmatpush2.msra.mxu0 0.0
        %965 = vmatprep.mubr.f32.mxu0 0.0
        %966 = vmatmul.mubr.f32.gmra.mxu0 %v371
        %v967 = vpop.f32.mrf.mxu0
        %v968 = vadd.f32 0.0, %v967
        %v969 = vpop.f32.mrf.mxu0
        %970 = vmatprep.mubr.f32.mxu0 0.0
        %971 = vmatmul.mubr.f32.gmra.mxu0 %v376
        %v972 = vpop.f32.mrf.mxu0
        %v973 = vadd.f32 0.0, %v972
        %v974 = vpop.f32.mrf.mxu0
        %975 = vdwg.mxu0
        %976 = vset.pattern.permute.xlu0 3
        %977 = vperm.xlu0 %976, %v660
        %v978 = vpop.permute.xlu0 %977
        %980 = vset.pattern.permute.xlu0 3
        %981 = vperm.xlu0 %980, %v661
        %v982 = vpop.permute.xlu0 %981
        %v984 = vmul.f32 %v978, %v968
        %v985 = vmul.f32 %v982, %v973
        %v986 = vadd.f32 %v882, %v984
        %v987 = vadd.f32 %v883, %v985
        %s988 = scalar_lea.vmem [#allocation2], 512
        %v989 = vld [vmem:[%s988] sm:$0xff]
        %v990 = vld [vmem:[%s988 + $0x8] sm:$0xff]
        %v991 = vld [vmem:[%s988 + $0x10] sm:$0xff]
        %v992 = vld [vmem:[%s988 + $0x18] sm:$0xff]
        %v993 = vld [vmem:[%s988 + $0x20] sm:$0xff]
        %v994 = vld [vmem:[%s988 + $0x28] sm:$0xff]
        %v995 = vld [vmem:[%s988 + $0x30] sm:$0xff]
        %v996 = vld [vmem:[%s988 + $0x38] sm:$0xff]
        %v997 = vld [vmem:[%s988 + $0x40] sm:$0xff]
        %v998 = vld [vmem:[%s988 + $0x48] sm:$0xff]
        %v999 = vld [vmem:[%s988 + $0x50] sm:$0xff]
        %v1000 = vld [vmem:[%s988 + $0x58] sm:$0xff]
        %v1001 = vld [vmem:[%s988 + $0x60] sm:$0xff]
        %v1002 = vld [vmem:[%s988 + $0x68] sm:$0xff]
        %v1003 = vld [vmem:[%s988 + $0x70] sm:$0xff]
        %v1004 = vld [vmem:[%s988 + $0x78] sm:$0xff]
        %1005 = vmatprep.subr.mxu0 0.0
        %1006 = vmatpush1.msra.mxu0 %v1004
        %1007 = vmatprep.subr.mxu0 0.0
        %1008 = vmatpush1.msra.mxu0 %v1003
        %1009 = vmatprep.subr.mxu0 0.0
        %1010 = vmatpush1.msra.mxu0 %v1002
        %1011 = vmatprep.subr.mxu0 0.0
        %1012 = vmatpush1.msra.mxu0 %v1001
        %1013 = vmatprep.subr.mxu0 0.0
        %1014 = vmatpush1.msra.mxu0 %v1000
        %1015 = vmatprep.subr.mxu0 0.0
        %1016 = vmatpush1.msra.mxu0 %v999
        %1017 = vmatprep.subr.mxu0 0.0
        %1018 = vmatpush1.msra.mxu0 %v998
        %1019 = vmatprep.subr.mxu0 0.0
        %1020 = vmatpush1.msra.mxu0 %v997
        %1021 = vmatprep.subr.mxu0 0.0
        %1022 = vmatpush1.msra.mxu0 %v996
        %1023 = vmatprep.subr.mxu0 0.0
        %1024 = vmatpush1.msra.mxu0 %v995
        %1025 = vmatprep.subr.mxu0 0.0
        %1026 = vmatpush1.msra.mxu0 %v994
        %1027 = vmatprep.subr.mxu0 0.0
        %1028 = vmatpush1.msra.mxu0 %v993
        %1029 = vmatprep.subr.mxu0 0.0
        %1030 = vmatpush1.msra.mxu0 %v992
        %1031 = vmatprep.subr.mxu0 0.0
        %1032 = vmatpush1.msra.mxu0 %v991
        %1033 = vmatprep.subr.mxu0 0.0
        %1034 = vmatpush1.msra.mxu0 %v990
        %1035 = vmatprep.subr.mxu0 0.0
        %1036 = vmatpush1.msra.mxu0 %v989
        %1037 = vmatprep.subr.mxu0 0.0
        %1038 = vmatpush2.msra.mxu0 0.0
        %1039 = vmatprep.subr.mxu0 0.0
        %1040 = vmatpush2.msra.mxu0 0.0
        %1041 = vmatprep.subr.mxu0 0.0
        %1042 = vmatpush2.msra.mxu0 0.0
        %1043 = vmatprep.subr.mxu0 0.0
        %1044 = vmatpush2.msra.mxu0 0.0
        %1045 = vmatprep.subr.mxu0 0.0
        %1046 = vmatpush2.msra.mxu0 0.0
        %1047 = vmatprep.subr.mxu0 0.0
        %1048 = vmatpush2.msra.mxu0 0.0
        %1049 = vmatprep.subr.mxu0 0.0
        %1050 = vmatpush2.msra.mxu0 0.0
        %1051 = vmatprep.subr.mxu0 0.0
        %1052 = vmatpush2.msra.mxu0 0.0
        %1053 = vmatprep.subr.mxu0 0.0
        %1054 = vmatpush2.msra.mxu0 0.0
        %1055 = vmatprep.subr.mxu0 0.0
        %1056 = vmatpush2.msra.mxu0 0.0
        %1057 = vmatprep.subr.mxu0 0.0
        %1058 = vmatpush2.msra.mxu0 0.0
        %1059 = vmatprep.subr.mxu0 0.0
        %1060 = vmatpush2.msra.mxu0 0.0
        %1061 = vmatprep.subr.mxu0 0.0
        %1062 = vmatpush2.msra.mxu0 0.0
        %1063 = vmatprep.subr.mxu0 0.0
        %1064 = vmatpush2.msra.mxu0 0.0
        %1065 = vmatprep.subr.mxu0 0.0
        %1066 = vmatpush2.msra.mxu0 0.0
        %1067 = vmatprep.subr.mxu0 0.0
        %1068 = vmatpush2.msra.mxu0 0.0
        %1069 = vmatprep.mubr.f32.mxu0 0.0
        %1070 = vmatmul.mubr.f32.gmra.mxu0 %v466
        %v1071 = vpop.f32.mrf.mxu0
        %v1072 = vadd.f32 0.0, %v1071
        %v1073 = vpop.f32.mrf.mxu0
        %1074 = vmatprep.mubr.f32.mxu0 0.0
        %1075 = vmatmul.mubr.f32.gmra.mxu0 %v471
        %v1076 = vpop.f32.mrf.mxu0
        %v1077 = vadd.f32 0.0, %v1076
        %v1078 = vpop.f32.mrf.mxu0
        %1079 = vdwg.mxu0
        %1080 = vset.pattern.permute.xlu0 4
        %1081 = vperm.xlu0 %1080, %v660
        %v1082 = vpop.permute.xlu0 %1081
        %1084 = vset.pattern.permute.xlu0 4
        %1085 = vperm.xlu0 %1084, %v661
        %v1086 = vpop.permute.xlu0 %1085
        %v1088 = vmul.f32 %v1082, %v1072
        %v1089 = vmul.f32 %v1086, %v1077
        %v1090 = vadd.f32 %v986, %v1088
        %v1091 = vadd.f32 %v987, %v1089
        %s1092 = scalar_lea.vmem [#allocation2], 640
        %v1093 = vld [vmem:[%s1092] sm:$0xff]
        %v1094 = vld [vmem:[%s1092 + $0x8] sm:$0xff]
        %v1095 = vld [vmem:[%s1092 + $0x10] sm:$0xff]
        %v1096 = vld [vmem:[%s1092 + $0x18] sm:$0xff]
        %v1097 = vld [vmem:[%s1092 + $0x20] sm:$0xff]
        %v1098 = vld [vmem:[%s1092 + $0x28] sm:$0xff]
        %v1099 = vld [vmem:[%s1092 + $0x30] sm:$0xff]
        %v1100 = vld [vmem:[%s1092 + $0x38] sm:$0xff]
        %v1101 = vld [vmem:[%s1092 + $0x40] sm:$0xff]
        %v1102 = vld [vmem:[%s1092 + $0x48] sm:$0xff]
        %v1103 = vld [vmem:[%s1092 + $0x50] sm:$0xff]
        %v1104 = vld [vmem:[%s1092 + $0x58] sm:$0xff]
        %v1105 = vld [vmem:[%s1092 + $0x60] sm:$0xff]
        %v1106 = vld [vmem:[%s1092 + $0x68] sm:$0xff]
        %v1107 = vld [vmem:[%s1092 + $0x70] sm:$0xff]
        %v1108 = vld [vmem:[%s1092 + $0x78] sm:$0xff]
        %1109 = vmatprep.subr.mxu0 0.0
        %1110 = vmatpush1.msra.mxu0 %v1108
        %1111 = vmatprep.subr.mxu0 0.0
        %1112 = vmatpush1.msra.mxu0 %v1107
        %1113 = vmatprep.subr.mxu0 0.0
        %1114 = vmatpush1.msra.mxu0 %v1106
        %1115 = vmatprep.subr.mxu0 0.0
        %1116 = vmatpush1.msra.mxu0 %v1105
        %1117 = vmatprep.subr.mxu0 0.0
        %1118 = vmatpush1.msra.mxu0 %v1104
        %1119 = vmatprep.subr.mxu0 0.0
        %1120 = vmatpush1.msra.mxu0 %v1103
        %1121 = vmatprep.subr.mxu0 0.0
        %1122 = vmatpush1.msra.mxu0 %v1102
        %1123 = vmatprep.subr.mxu0 0.0
        %1124 = vmatpush1.msra.mxu0 %v1101
        %1125 = vmatprep.subr.mxu0 0.0
        %1126 = vmatpush1.msra.mxu0 %v1100
        %1127 = vmatprep.subr.mxu0 0.0
        %1128 = vmatpush1.msra.mxu0 %v1099
        %1129 = vmatprep.subr.mxu0 0.0
        %1130 = vmatpush1.msra.mxu0 %v1098
        %1131 = vmatprep.subr.mxu0 0.0
        %1132 = vmatpush1.msra.mxu0 %v1097
        %1133 = vmatprep.subr.mxu0 0.0
        %1134 = vmatpush1.msra.mxu0 %v1096
        %1135 = vmatprep.subr.mxu0 0.0
        %1136 = vmatpush1.msra.mxu0 %v1095
        %1137 = vmatprep.subr.mxu0 0.0
        %1138 = vmatpush1.msra.mxu0 %v1094
        %1139 = vmatprep.subr.mxu0 0.0
        %1140 = vmatpush1.msra.mxu0 %v1093
        %1141 = vmatprep.subr.mxu0 0.0
        %1142 = vmatpush2.msra.mxu0 0.0
        %1143 = vmatprep.subr.mxu0 0.0
        %1144 = vmatpush2.msra.mxu0 0.0
        %1145 = vmatprep.subr.mxu0 0.0
        %1146 = vmatpush2.msra.mxu0 0.0
        %1147 = vmatprep.subr.mxu0 0.0
        %1148 = vmatpush2.msra.mxu0 0.0
        %1149 = vmatprep.subr.mxu0 0.0
        %1150 = vmatpush2.msra.mxu0 0.0
        %1151 = vmatprep.subr.mxu0 0.0
        %1152 = vmatpush2.msra.mxu0 0.0
        %1153 = vmatprep.subr.mxu0 0.0
        %1154 = vmatpush2.msra.mxu0 0.0
        %1155 = vmatprep.subr.mxu0 0.0
        %1156 = vmatpush2.msra.mxu0 0.0
        %1157 = vmatprep.subr.mxu0 0.0
        %1158 = vmatpush2.msra.mxu0 0.0
        %1159 = vmatprep.subr.mxu0 0.0
        %1160 = vmatpush2.msra.mxu0 0.0
        %1161 = vmatprep.subr.mxu0 0.0
        %1162 = vmatpush2.msra.mxu0 0.0
        %1163 = vmatprep.subr.mxu0 0.0
        %1164 = vmatpush2.msra.mxu0 0.0
        %1165 = vmatprep.subr.mxu0 0.0
        %1166 = vmatpush2.msra.mxu0 0.0
        %1167 = vmatprep.subr.mxu0 0.0
        %1168 = vmatpush2.msra.mxu0 0.0
        %1169 = vmatprep.subr.mxu0 0.0
        %1170 = vmatpush2.msra.mxu0 0.0
        %1171 = vmatprep.subr.mxu0 0.0
        %1172 = vmatpush2.msra.mxu0 0.0
        %1173 = vmatprep.mubr.f32.mxu0 0.0
        %1174 = vmatmul.mubr.f32.gmra.mxu0 %v561
        %v1175 = vpop.f32.mrf.mxu0
        %v1176 = vadd.f32 0.0, %v1175
        %v1177 = vpop.f32.mrf.mxu0
        %1178 = vmatprep.mubr.f32.mxu0 0.0
        %1179 = vmatmul.mubr.f32.gmra.mxu0 %v566
        %v1180 = vpop.f32.mrf.mxu0
        %v1181 = vadd.f32 0.0, %v1180
        %v1182 = vpop.f32.mrf.mxu0
        %1183 = vdwg.mxu0
        %1184 = vset.pattern.permute.xlu0 5
        %1185 = vperm.xlu0 %1184, %v660
        %v1186 = vpop.permute.xlu0 %1185
        %1188 = vset.pattern.permute.xlu0 5
        %1189 = vperm.xlu0 %1188, %v661
        %v1190 = vpop.permute.xlu0 %1189
        %v1192 = vmul.f32 %v1186, %v1176
        %v1193 = vmul.f32 %v1190, %v1181
        %v1194 = vadd.f32 %v1090, %v1192
        %v1195 = vadd.f32 %v1091, %v1193
        %1196 = vst [vmem:[%s249] sm:$0xff] %v1194
        %1197 = vst [vmem:[%s249 + $0x8] sm:$0xff] %v1195
        %s1198 = sand.u32 %s143, 1
        %s1199 = scalar_lea.sflag [#allocation4], %s1198
        %s1200 = sand.u32 %s143, 1
        %s1201 = smul.addr %s1200, 16
        %s1202 = scalar_lea.vmem [#allocation5], %s1201
        // Predicated region
        $region45: #{tpu_custom_call.1} parent=39 // pred_check
          %p1203 = pneg %p153
        $region46: #{tpu_custom_call.1} parent=39 // pred_check_branch
          %1205 = sbr.rel (%p1203) target = $region48
        $region47: #{tpu_custom_call.1} parent=39 // pred_region
          %s1206 = smul.u32 2, %s20
          %s1208 = ssub.s32 256, 256
          %1209 = vsyncadd %s1199, %s1208
          %s1210 = smul.addr %s1206, 128
          %s1211 = scalar_lea.hbm %s5, %s1210
          %s1212 = sshll.u32 %s1202, 4
          %s1213 = int_to_ptr.vmem [resolvable:$true] %s1212
          %1218 = dma.vmem_to_hbm [thread:$0]  %s1213, 256, %s1211, %s1199, 128, 128, 8
        $region48: #{tpu_custom_call.1} parent=39 // pred_fallthru
          _
      $region40: #{tpu_custom_call.1} parent=5 // pred_fallthru
        _
      %p1219 = scmp.le.s32.totalorder 2, %s15
      // Predicated region
      $region49: #{tpu_custom_call.1} parent=5 // pred_check
        %p1220 = pneg %p1219
      $region50: #{tpu_custom_call.1} parent=5 // pred_check_branch
        %1222 = sbr.rel (%p1220) target = $region52
      $region51: #{tpu_custom_call.1} parent=5 // pred_region
        %s1223 = ssub.s32 %s15, 2
        // Predicated region
        $region53: #{tpu_custom_call.1} parent=51 // pred_check
          %p1224 = pneg %p159
        $region54: #{tpu_custom_call.1} parent=51 // pred_check_branch
          %1226 = sbr.rel (%p1224) target = $region56
        $region55: #{tpu_custom_call.1} parent=51 // pred_region
          %s1227 = sand.u32 %s144, 1
          %s1228 = scalar_lea.sflag [#allocation4], %s1227
          %s1229 = sand.u32 %s144, 1
          %s1230 = smul.addr %s1229, 16
          %s1231 = scalar_lea.vmem [#allocation5], %s1230
          %1232 = dma.done %s1228, 256
        $region56: #{tpu_custom_call.1} parent=51 // pred_fallthru
          _
      $region52: #{tpu_custom_call.1} parent=5 // pred_fallthru
        _
    $region6: #{tpu_custom_call.1} parent=1 // loop_footer
      %s19 = sadd.s32 1, %s15
    $region7: #{tpu_custom_call.1} parent=1 // loop_footer_branch
      %14 = sbr.rel target = $region3
    $region8: #{tpu_custom_call.1} parent=1 // loop_exit
      _
    %1233 = vsyncpa [#allocation3], 1
    %s1234 = scalar_lea.sflag [#allocation3], 1
    %1235 = vsyncpa %s1234, 1
    %1236 = vsyncpa [#allocation4], 1
    %s1237 = scalar_lea.sflag [#allocation4], 1
    %1238 = vsyncpa %s1237, 1

</llo_original>
